<compile_context>
chip_gen: v6e
topology: v6e:2x2x1
jax: 0.10.0
libtpu: 0.0.40
codegen_flags: <defaults>
</compile_context>

<pallas_src>
import math

import jax
import jax.numpy as jnp
from jax.experimental import pallas as pl
from jax.experimental.pallas import tpu as pltpu


def _round_up(x: int, m: int) -> int:
    return -(-x // m) * m


def _sinusoidal_kernel(tab_ref, t_ref, out_ref):
    # tab_ref : (pack+1, W) constant table
    #             rows 0..pack-1 : "frequency bands" -- row j holds
    #                              freq_full = [freq_half|freq_half] in lanes
    #                              [j*dim, (j+1)*dim) and exact zeros elsewhere
    #             row  pack      : cos-select mask (1.0 on cos columns, else 0.0)
    # t_ref   : (TR, pack)  packed timesteps (pack logical rows per sublane row)
    # out_ref : (TR, W)     lane-dense packed output
    pack = t_ref.shape[1]
    # arg[p, j*dim + c] = t[p, j] * freq_full[c]; other bands contribute exact 0.
    arg = t_ref[:, 0:1] * tab_ref[0:1, :]
    for j in range(1, pack):                      # static unroll, pack <= 32
        arg = arg + t_ref[:, j:j + 1] * tab_ref[j:j + 1, :]
    m = tab_ref[pack:pack + 1, :]                 # (1, W), exactly 0.0 or 1.0
    out = m * jnp.cos(arg) + (1.0 - m) * jnp.sin(arg)   # exact select
    out_ref[...] = out.astype(out_ref.dtype)


def sinusoidal_pos_emb(t: jax.Array, dim: int, *, out_dtype=jnp.float32,
                       force_pallas: bool = False,
                       min_pallas_bytes: int = 256 * 1024,
                       target_tile_bytes: int = 1 << 20) -> jax.Array:
    """JAX/Pallas equivalent of SinusoidalPosEmb(dim)(t).

    t: (B,) float timesteps.  Returns (B, dim) = concat([sin, cos], -1).
    """
    assert dim % 2 == 0, "dim must be even"
    half_dim = dim // 2
    assert half_dim > 1, "dim == 2 divides by zero (matches the PyTorch module)"

    t = jnp.asarray(t).reshape(-1)
    b = t.shape[0]
    log_scale = math.log(10000.0) / (half_dim - 1)
    freq_half = jnp.exp(jnp.arange(half_dim, dtype=jnp.float32) * (-log_scale))

    out_itemsize = jnp.dtype(out_dtype).itemsize

    # ---- small-shape fast path: let XLA fuse it, skip kernel launch/DMA. ----
    if not force_pallas and b * dim * out_itemsize < min_pallas_bytes:
        emb = t.astype(jnp.float32)[:, None] * freq_half[None, :]
        return jnp.concatenate([jnp.sin(emb), jnp.cos(emb)], axis=-1).astype(out_dtype)

    # ---- Pallas path ----
    # Pack `pack` logical rows per 128-lane row when dim divides 128 (lane-dense
    # stores); otherwise fall back to one logical row per output row.
    pack = 128 // dim if (dim <= 128 and 128 % dim == 0) else 1
    w = pack * dim

    # Constant table (built with plain jnp; constant-folded by XLA).
    freq_full = jnp.concatenate([freq_half, freq_half])                 # (dim,)
    eye = jnp.eye(pack, dtype=jnp.float32)
    freq_bands = (eye[:, :, None] * freq_full[None, None, :]).reshape(pack, w)
    cos_mask = (jnp.arange(dim) >= half_dim).astype(jnp.float32)
    mask_row = jnp.tile(cos_mask, pack).reshape(1, w)
    table = jnp.concatenate([freq_bands, mask_row], axis=0)             # (pack+1, w)

    # Byte-based tile sizing (~1 MiB of output / grid step).  bf16 output wants
    # a multiple of 16 rows (16 sublanes per packed vreg).
    row_mult = 16 if out_itemsize == 2 else 8
    r_rows = pl.cdiv(b, pack)                       # packed rows actually needed
    tr = max(row_mult, (target_tile_bytes // (4 * w)) // row_mult * row_mult)
    tr = min(tr, _round_up(r_rows, row_mult))       # don't over-pad tiny batches
    if r_rows > row_mult and pl.cdiv(r_rows, tr) < 2:
        # >= 2 grid steps so the "parallel" axis can shard across 2 TCs (v7x).
        tr = _round_up(pl.cdiv(r_rows, 2), row_mult)
    n_tiles = pl.cdiv(r_rows, tr)
    r_pad = n_tiles * tr
    bp = r_pad * pack

    t_pad = t.astype(jnp.float32)
    if bp != b:
        # Padded rows compute emb(t=0); they are truncated below, never read.
        t_pad = jnp.pad(t_pad, (0, bp - b))
    t2 = t_pad.reshape(r_pad, pack)

    out = pl.pallas_call(
        _sinusoidal_kernel,
        out_shape=jax.ShapeDtypeStruct((r_pad, w), out_dtype),
        grid=(n_tiles,),
        in_specs=[
            pl.BlockSpec((pack + 1, w), lambda i: (0, 0)),   # constant table (resident)
            pl.BlockSpec((tr, pack), lambda i: (i, 0)),      # packed timesteps
        ],
        out_specs=pl.BlockSpec((tr, w), lambda i: (i, 0)),
        compiler_params=pltpu.CompilerParams(
            dimension_semantics=("parallel",)),
    )(table, t2)

    # Contiguous (free) reshape back to the logical (B, dim) layout.
    return out.reshape(r_pad * pack, dim)[:b]


def _reference(t: jax.Array, dim: int) -> jax.Array:
    half_dim = dim // 2
    s = math.log(10000.0) / (half_dim - 1)
    freq = jnp.exp(jnp.arange(half_dim, dtype=jnp.float32) * -s)
    emb = t.astype(jnp.float32)[:, None] * freq[None, :]
    return jnp.concatenate([jnp.sin(emb), jnp.cos(emb)], axis=-1)


if __name__ == "__main__":
    key = jax.random.PRNGKey(0)
    B, DIM = 8, 32
    t = jax.random.uniform(key, (B,), dtype=jnp.float32, minval=0.0, maxval=1000.0)
    ref = _reference(t, DIM)

    # 1) Pallas kernel (forced; at this tiny production shape the default
    #    dispatch would take the fused-jnp fast path).
    out_k = jax.block_until_ready(sinusoidal_pos_emb(t, DIM, force_pallas=True))
    assert out_k.shape == (B, DIM)
    assert jnp.allclose(out_k, ref, atol=5e-5, rtol=1e-5), "pallas kernel mismatch"

    # 2) Default dispatch -> small-shape fast path (pure jnp).
    out_f = jax.block_until_ready(sinusoidal_pos_emb(t, DIM))
    assert jnp.allclose(out_f, ref, atol=1e-6, rtol=1e-6), "fast path mismatch"

    # 3) Multi-tile / non-multiple-of-pack batch through the Pallas path.
    t2 = jax.random.uniform(jax.random.PRNGKey(1), (300,), dtype=jnp.float32,
                            minval=0.0, maxval=1000.0)
    out2 = jax.block_until_ready(
        sinusoidal_pos_emb(t2, DIM, force_pallas=True, target_tile_bytes=4096))
    assert out2.shape == (300, DIM)
    assert jnp.allclose(out2, _reference(t2, DIM), atol=5e-5, rtol=1e-5), \
        "multi-tile mismatch"

    print("KERNEL_OK")
</pallas_src>

<mosaic_0001>
module attributes {stable_mosaic.version = 11 : i64} {
  func.func @_sinusoidal_kernel(%arg0: i32, %arg1: memref<5x128xf32, #tpu.memory_space<vmem>>, %arg2: memref<8x4xf32, #tpu.memory_space<vmem>>, %arg3: memref<8x128xf32, #tpu.memory_space<vmem>>) attributes {dimension_semantics = [#tpu.dimension_semantics<parallel>], iteration_bounds = array<i64: 1>, scalar_prefetch = 0 : i64, scratch_operands = 0 : i64, tpu.core_type = #tpu.core_type<tc>, window_params = [{pipeline_mode = #tpu.pipeline_mode<synchronous>, transform_indices = @transform_0, window_bounds = array<i64: 5, 128>}, {transform_indices = @transform_1, window_bounds = array<i64: 8, 4>}, {transform_indices = @transform_2, window_bounds = array<i64: 8, 128>}]} {
    %c0 = arith.constant 0 : index
    %c0_0 = arith.constant 0 : index
    %0 = vector.load %arg2[%c0, %c0_0] : memref<8x4xf32, #tpu.memory_space<vmem>>, vector<8x1xf32>
    %c0_1 = arith.constant 0 : index
    %c0_2 = arith.constant 0 : index
    %1 = vector.load %arg1[%c0_1, %c0_2] : memref<5x128xf32, #tpu.memory_space<vmem>>, vector<1x128xf32>
    %2 = vector.broadcast %0 : vector<8x1xf32> to vector<8x128xf32>
    %3 = vector.broadcast %1 : vector<1x128xf32> to vector<8x128xf32>
    %4 = arith.mulf %2, %3 : vector<8x128xf32>
    %c0_3 = arith.constant 0 : index
    %c1 = arith.constant 1 : index
    %5 = vector.load %arg2[%c0_3, %c1] : memref<8x4xf32, #tpu.memory_space<vmem>>, vector<8x1xf32>
    %c1_4 = arith.constant 1 : index
    %c0_5 = arith.constant 0 : index
    %6 = vector.load %arg1[%c1_4, %c0_5] : memref<5x128xf32, #tpu.memory_space<vmem>>, vector<1x128xf32>
    %7 = vector.broadcast %5 : vector<8x1xf32> to vector<8x128xf32>
    %8 = vector.broadcast %6 : vector<1x128xf32> to vector<8x128xf32>
    %9 = arith.mulf %7, %8 : vector<8x128xf32>
    %10 = arith.addf %4, %9 : vector<8x128xf32>
    %c0_6 = arith.constant 0 : index
    %c2 = arith.constant 2 : index
    %11 = vector.load %arg2[%c0_6, %c2] : memref<8x4xf32, #tpu.memory_space<vmem>>, vector<8x1xf32>
    %c2_7 = arith.constant 2 : index
    %c0_8 = arith.constant 0 : index
    %12 = vector.load %arg1[%c2_7, %c0_8] : memref<5x128xf32, #tpu.memory_space<vmem>>, vector<1x128xf32>
    %13 = vector.broadcast %11 : vector<8x1xf32> to vector<8x128xf32>
    %14 = vector.broadcast %12 : vector<1x128xf32> to vector<8x128xf32>
    %15 = arith.mulf %13, %14 : vector<8x128xf32>
    %16 = arith.addf %10, %15 : vector<8x128xf32>
    %c0_9 = arith.constant 0 : index
    %c3 = arith.constant 3 : index
    %17 = vector.load %arg2[%c0_9, %c3] : memref<8x4xf32, #tpu.memory_space<vmem>>, vector<8x1xf32>
    %c3_10 = arith.constant 3 : index
    %c0_11 = arith.constant 0 : index
    %18 = vector.load %arg1[%c3_10, %c0_11] : memref<5x128xf32, #tpu.memory_space<vmem>>, vector<1x128xf32>
    %19 = vector.broadcast %17 : vector<8x1xf32> to vector<8x128xf32>
    %20 = vector.broadcast %18 : vector<1x128xf32> to vector<8x128xf32>
    %21 = arith.mulf %19, %20 : vector<8x128xf32>
    %22 = arith.addf %16, %21 : vector<8x128xf32>
    %c4 = arith.constant 4 : index
    %c0_12 = arith.constant 0 : index
    %23 = vector.load %arg1[%c4, %c0_12] : memref<5x128xf32, #tpu.memory_space<vmem>>, vector<1x128xf32>
    %24 = math.cos %22 : vector<8x128xf32>
    %25 = vector.broadcast %23 : vector<1x128xf32> to vector<8x128xf32>
    %26 = arith.mulf %25, %24 : vector<8x128xf32>
    %cst = arith.constant 1.000000e+00 : f32
    %27 = vector.broadcast %cst : f32 to vector<1x128xf32>
    %28 = arith.subf %27, %23 : vector<1x128xf32>
    %29 = math.sin %22 : vector<8x128xf32>
    %30 = vector.broadcast %28 : vector<1x128xf32> to vector<8x128xf32>
    %31 = arith.mulf %30, %29 : vector<8x128xf32>
    %32 = arith.addf %26, %31 : vector<8x128xf32>
    %c0_13 = arith.constant 0 : index
    %c0_14 = arith.constant 0 : index
    %33 = vector.load %arg3[%c0_13, %c0_14] : memref<8x128xf32, #tpu.memory_space<vmem>>, vector<8x128xf32>
    tpu.vector_store %arg3[%c0_13, %c0_14], %32 {strides = array<i32>} : memref<8x128xf32, #tpu.memory_space<vmem>>, vector<8x128xf32>,
    return
  }
  func.func @transform_0(%arg0: i32) -> (i32, i32) {
    %c0_i32 = arith.constant 0 : i32
    %c0_i32_0 = arith.constant 0 : i32
    %c0_i32_1 = arith.constant 0 : i32
    return %c0_i32, %c0_i32_0 : i32, i32
  }
  func.func @transform_1(%arg0: i32) -> (i32, i32) {
    %c0_i32 = arith.constant 0 : i32
    %c0_i32_0 = arith.constant 0 : i32
    return %arg0, %c0_i32 : i32, i32
  }
  func.func @transform_2(%arg0: i32) -> (i32, i32) {
    %c0_i32 = arith.constant 0 : i32
    %c0_i32_0 = arith.constant 0 : i32
    return %arg0, %c0_i32 : i32, i32
  }
}

</mosaic_0001>

<llo_original>
// kernel: tpu_custom_call.1
$region0: #{tpu_custom_call.1}
  #allocation0 [shape = 'u32[]', space=smem, size = 0x4, offset = 0x4, fixed_abs, tag = 'smem constant byte address 0x4 - core index']
  #allocation1 [shape = 'u32[144,128]{1,0:T(1,128)}', space=vmem, size = 0x12000, scoped, tag = 'internal scratch']
  %s0 = inlined_call_operand.vmem [shape: f32[5,128], index: 0, kind: input, shape index: {}]
  %s1 = inlined_call_operand.vmem [shape: f32[8,4], index: 1, kind: input, shape index: {}]
  %s2 = inlined_call_operand.hbm [shape: f32[8,128], index: 2, kind: output, shape index: {}]
  %s3 = sld [smem:[#allocation0]]
  $region18: #{tpu_custom_call.1} parent=0
    _
  %s5 = ssub.s32 1, %s3
  %s6 = scalar_select 0, %s5, %s3
  $region1: #{tpu_custom_call.1} parent=0
    #allocation2 [shape = 'u8[4096]{0}', space=vmem, size = 0x1000, scoped, tag = 'output window, operand 0, single buffered']
    #allocation3 [shape = 's32[1]{0}', space=sflag, size = 0x4, scoped, tag = 'scoped memory for tpu_custom_call.1']
    %7 = vsyncpa [#allocation3], 0
    // Predicated region
    $region2: #{tpu_custom_call.1} parent=1 // pred_check
      _
    $region3: #{tpu_custom_call.1} parent=1 // pred_check_branch
      %9 = sbr.rel (0) target = $region5
    $region4: #{tpu_custom_call.1} parent=1 // pred_region
      _
    $region5: #{tpu_custom_call.1} parent=1 // pred_fallthru
      _
    // Predicated region
    $region6: #{tpu_custom_call.1} parent=1 // pred_check
      _
    $region7: #{tpu_custom_call.1} parent=1 // pred_check_branch
      %11 = sbr.rel (0) target = $region9
    $region8: #{tpu_custom_call.1} parent=1 // pred_region
      _
    $region9: #{tpu_custom_call.1} parent=1 // pred_fallthru
      _
    %v12 = vld [vmem:[%s1] sm:$0xff]
    %v13 = vld [vmem:[%s0] sm:$0x1]
    %15 = vset.pattern.permute.xlu0 0
    %16 = vperm.xlu0 %15, %v12
    %v17 = vpop.permute.xlu0 %16
    %v19 = vlaneseq
    %v20 = vshrl.u32 %v19, 7
    %v21 = vsub.s32 0, %v20
    %v22 = vrot.slane %v13, %v21
    %v23 = vmul.f32 %v17, %v22
    %v24 = vld [vmem:[%s0 + $0x1] sm:$0x1]
    %25 = vset.pattern.permute.xlu0 1
    %26 = vperm.xlu0 %25, %v12
    %v27 = vpop.permute.xlu0 %26
    %v29 = vlaneseq
    %v30 = vshrl.u32 %v29, 7
    %v31 = vsub.s32 0, %v30
    %v32 = vrot.slane %v24, %v31
    %v33 = vmul.f32 %v27, %v32
    %v34 = vadd.f32 %v23, %v33
    %v35 = vld [vmem:[%s0 + $0x2] sm:$0x1]
    %36 = vset.pattern.permute.xlu0 2
    %37 = vperm.xlu0 %36, %v12
    %v38 = vpop.permute.xlu0 %37
    %v40 = vlaneseq
    %v41 = vshrl.u32 %v40, 7
    %v42 = vsub.s32 0, %v41
    %v43 = vrot.slane %v35, %v42
    %v44 = vmul.f32 %v38, %v43
    %v45 = vadd.f32 %v34, %v44
    %v46 = vld [vmem:[%s0 + $0x3] sm:$0x1]
    %47 = vset.pattern.permute.xlu0 3
    %48 = vperm.xlu0 %47, %v12
    %v49 = vpop.permute.xlu0 %48
    %v51 = vlaneseq
    %v52 = vshrl.u32 %v51, 7
    %v53 = vsub.s32 0, %v52
    %v54 = vrot.slane %v46, %v53
    %v55 = vmul.f32 %v49, %v54
    %v56 = vadd.f32 %v45, %v55
    %v57 = vld [vmem:[%s0 + $0x4] sm:$0x1]
    %v58 = vand.u32 2147483647, %v56
    %vm59 = vcmp.le.f32.partialorder %v58, 0.7853982
    %vm60 = vcmp.lt.s32.totalorder %v56, 0
    %v61 = vand.u32 %v56, 2139095040
    %v62 = vshrl.u32 %v61, 23
    %v63 = vsub.s32 %v62, 127
    %v64 = vand.u32 2147483647, %v56
    %v65 = vand.u32 %v64, 8388607
    %v66 = vor.u32 %v65, 8388608
    %v67 = vsub.s32 0, %v66
    %v68 = vadd.s32 %v63, 1
    %vm69 = vcmp.gt.s32.totalorder %v68, 0
    %v70 = vsel %vm69, %v68, 0
    %v71 = vshrl.u32 %v70, 5
    %v72 = vand.u32 %v70, 31
    %v73 = vsub.s32 32, %v72
    %v74 = vshrl.u32 683565275, %v73
    %v75 = vshll.u32 683565275, %v72
    %v76 = vshrl.u32 2475754826, %v73
    %v77 = vor.u32 %v75, %v76
    %v78 = vshll.u32 2475754826, %v72
    %v79 = vshrl.u32 2131351028, %v73
    %v80 = vor.u32 %v78, %v79
    %v81 = vshll.u32 2131351028, %v72
    %v82 = vshrl.u32 2102212464, %v73
    %v83 = vor.u32 %v81, %v82
    %v84 = vshll.u32 2102212464, %v72
    %v85 = vshrl.u32 920167782, %v73
    %v86 = vor.u32 %v84, %v85
    %v87 = vshll.u32 920167782, %v72
    %v88 = vshrl.u32 1326507024, %v73
    %v89 = vor.u32 %v87, %v88
    %vm90 = vcmp.lt.s32.totalorder %v71, 1
    %vm91 = vcmp.lt.s32.totalorder %v71, 2
    %vm92 = vcmp.lt.s32.totalorder %v71, 3
    %vm93 = vcmp.lt.s32.totalorder %v71, 4
    %v94 = vsel %vm90, %v74, %v77
    %v95 = vsel %vm93, %v83, 2102212464
    %v96 = vsel %vm92, %v80, %v95
    %v97 = vsel %vm91, %v94, %v96
    %v98 = vsel %vm90, %v77, %v80
    %v99 = vsel %vm93, %v86, 920167782
    %v100 = vsel %vm92, %v83, %v99
    %v101 = vsel %vm91, %v98, %v100
    %v102 = vsel %vm90, %v80, %v83
    %v103 = vsel %vm93, %v89, 1326507024
    %v104 = vsel %vm92, %v86, %v103
    %v105 = vsel %vm91, %v102, %v104
    %v106 = vshll.u32 %v66, 8
    %v107 = vmul.u32.u64.compose %v106, %v105
    %v108 = vextract.low.u32 %v107
    %v109 = vextract.high.u32 %v107
    %v110 = vmul.u32.u64.compose %v106, %v101
    %v111 = vextract.low.u32 %v110
    %v112 = vextract.high.u32 %v110
    %v113 = vmul.u32 %v106, %v97
    %v114 = vadd.s32 %v109, %v111
    %vm115 = vc.u32 %v109, %v111
    %v116 = vadd.s32 %v112, 1
    %v117 = vsel %vm115, %v116, %v112
    %v118 = vadd.s32 %v113, %v117
    %v119 = vadd.s32 %v118, 536870912
    %v120 = vshrl.u32 %v119, 30
    %v121 = vshll.u32 %v120, 30
    %v122 = vsub.s32 %v118, %v121
    %vm123 = vcmp.lt.s32.totalorder %v122, 0
    %v124 = vsub.s32 0, %v122
    %v125 = vsel %vm123, %v124, %v122
    %v126 = vclz %v125
    %v127 = vsub.s32 %v126, 2
    %vm128 = vcmp.gt.s32.totalorder 0, %v127
    %v129 = vsel %vm128, 0, %v127
    %v130 = vsub.s32 32, %v129
    %v131 = vshll.u32 %v122, %v129
    %v132 = vshrl.u32 %v114, %v130
    %v133 = vor.u32 %v131, %v132
    %v134 = vsub.s32 4294967266, %v129
    %v135 = vadd.s32 %v134, 127
    %v136 = vshll.u32 %v135, 23
    %v137 = vor.u32 4788187, %v136
    %v138 = vand.u32 2147483647, %v137
    %v140 = vcvt.s32.f32 %v133
    %v141 = vmul.f32 %v140, %v138
    %v142 = vxor.u32 %v141, 2147483648
    %v143 = vsel %vm60, %v142, %v141
    %v144 = vsub.s32 4, %v120
    %v145 = vsel %vm60, %v144, %v120
    %v146 = vsel %vm59, %v56, %v143
    %v147 = vsel %vm59, 0, %v145
    %v148 = vcosq.f32.pop %v146
    %v149 = vsinq.f32.pop %v146
    %vm150 = vweird.f32 %v56
    %v151 = vand.u32 %v147, 3
    %vm152 = vcmp.lt.s32.totalorder %v151, 2
    %vm153 = vcmp.eq.s32.totalorder %v151, 0
    %v154 = vxor.u32 %v149, 2147483648
    %v155 = vsel %vm153, %v148, %v154
    %vm156 = vcmp.eq.s32.totalorder %v151, 2
    %v157 = vxor.u32 %v148, 2147483648
    %v158 = vsel %vm156, %v157, %v149
    %v159 = vsel %vm152, %v155, %v158
    %v160 = vsel %vm150, nan, %v159
    %v161 = vlaneseq
    %v162 = vshrl.u32 %v161, 7
    %v163 = vsub.s32 0, %v162
    %v164 = vrot.slane %v57, %v163
    %v165 = vmul.f32 %v164, %v160
    %v166 = vsub.f32 1.0, %v57
    %v167 = vand.u32 2147483647, %v56
    %vm168 = vcmp.le.f32.partialorder %v167, 0.7853982
    %vm169 = vcmp.lt.s32.totalorder %v56, 0
    %v170 = vand.u32 %v56, 2139095040
    %v171 = vshrl.u32 %v170, 23
    %v172 = vsub.s32 %v171, 127
    %v173 = vand.u32 2147483647, %v56
    %v174 = vand.u32 %v173, 8388607
    %v175 = vor.u32 %v174, 8388608
    %v176 = vsub.s32 0, %v175
    %v177 = vadd.s32 %v172, 1
    %vm178 = vcmp.gt.s32.totalorder %v177, 0
    %v179 = vsel %vm178, %v177, 0
    %v180 = vshrl.u32 %v179, 5
    %v181 = vand.u32 %v179, 31
    %v182 = vsub.s32 32, %v181
    %v183 = vshrl.u32 683565275, %v182
    %v184 = vshll.u32 683565275, %v181
    %v185 = vshrl.u32 2475754826, %v182
    %v186 = vor.u32 %v184, %v185
    %v187 = vshll.u32 2475754826, %v181
    %v188 = vshrl.u32 2131351028, %v182
    %v189 = vor.u32 %v187, %v188
    %v190 = vshll.u32 2131351028, %v181
    %v191 = vshrl.u32 2102212464, %v182
    %v192 = vor.u32 %v190, %v191
    %v193 = vshll.u32 2102212464, %v181
    %v194 = vshrl.u32 920167782, %v182
    %v195 = vor.u32 %v193, %v194
    %v196 = vshll.u32 920167782, %v181
    %v197 = vshrl.u32 1326507024, %v182
    %v198 = vor.u32 %v196, %v197
    %vm199 = vcmp.lt.s32.totalorder %v180, 1
    %vm200 = vcmp.lt.s32.totalorder %v180, 2
    %vm201 = vcmp.lt.s32.totalorder %v180, 3
    %vm202 = vcmp.lt.s32.totalorder %v180, 4
    %v203 = vsel %vm199, %v183, %v186
    %v204 = vsel %vm202, %v192, 2102212464
    %v205 = vsel %vm201, %v189, %v204
    %v206 = vsel %vm200, %v203, %v205
    %v207 = vsel %vm199, %v186, %v189
    %v208 = vsel %vm202, %v195, 920167782
    %v209 = vsel %vm201, %v192, %v208
    %v210 = vsel %vm200, %v207, %v209
    %v211 = vsel %vm199, %v189, %v192
    %v212 = vsel %vm202, %v198, 1326507024
    %v213 = vsel %vm201, %v195, %v212
    %v214 = vsel %vm200, %v211, %v213
    %v215 = vshll.u32 %v175, 8
    %v216 = vmul.u32.u64.compose %v215, %v214
    %v217 = vextract.low.u32 %v216
    %v218 = vextract.high.u32 %v216
    %v219 = vmul.u32.u64.compose %v215, %v210
    %v220 = vextract.low.u32 %v219
    %v221 = vextract.high.u32 %v219
    %v222 = vmul.u32 %v215, %v206
    %v223 = vadd.s32 %v218, %v220
    %vm224 = vc.u32 %v218, %v220
    %v225 = vadd.s32 %v221, 1
    %v226 = vsel %vm224, %v225, %v221
    %v227 = vadd.s32 %v222, %v226
    %v228 = vadd.s32 %v227, 536870912
    %v229 = vshrl.u32 %v228, 30
    %v230 = vshll.u32 %v229, 30
    %v231 = vsub.s32 %v227, %v230
    %vm232 = vcmp.lt.s32.totalorder %v231, 0
    %v233 = vsub.s32 0, %v231
    %v234 = vsel %vm232, %v233, %v231
    %v235 = vclz %v234
    %v236 = vsub.s32 %v235, 2
    %vm237 = vcmp.gt.s32.totalorder 0, %v236
    %v238 = vsel %vm237, 0, %v236
    %v239 = vsub.s32 32, %v238
    %v240 = vshll.u32 %v231, %v238
    %v241 = vshrl.u32 %v223, %v239
    %v242 = vor.u32 %v240, %v241
    %v243 = vsub.s32 4294967266, %v238
    %v244 = vadd.s32 %v243, 127
    %v245 = vshll.u32 %v244, 23
    %v246 = vor.u32 4788187, %v245
    %v247 = vand.u32 2147483647, %v246
    %v249 = vcvt.s32.f32 %v242
    %v250 = vmul.f32 %v249, %v247
    %v251 = vxor.u32 %v250, 2147483648
    %v252 = vsel %vm169, %v251, %v250
    %v253 = vsub.s32 4, %v229
    %v254 = vsel %vm169, %v253, %v229
    %v255 = vsel %vm168, %v56, %v252
    %v256 = vsel %vm168, 0, %v254
    %v257 = vcosq.f32.pop %v255
    %v258 = vsinq.f32.pop %v255
    %vm259 = vweird.f32 %v56
    %v260 = vadd.s32 %v256, 3
    %v261 = vand.u32 %v260, 3
    %vm262 = vcmp.lt.s32.totalorder %v261, 2
    %vm263 = vcmp.eq.s32.totalorder %v261, 0
    %v264 = vxor.u32 %v258, 2147483648
    %v265 = vsel %vm263, %v257, %v264
    %vm266 = vcmp.eq.s32.totalorder %v261, 2
    %v267 = vxor.u32 %v257, 2147483648
    %v268 = vsel %vm266, %v267, %v258
    %v269 = vsel %vm262, %v265, %v268
    %v270 = vsel %vm259, nan, %v269
    %v271 = vlaneseq
    %v272 = vshrl.u32 %v271, 7
    %v273 = vsub.s32 0, %v272
    %v274 = vrot.slane %v166, %v273
    %v275 = vmul.f32 %v274, %v270
    %v276 = vadd.f32 %v165, %v275
    %277 = vst [vmem:[#allocation2] sm:$0xff] %v276
    // Predicated region
    $region10: #{tpu_custom_call.1} parent=1 // pred_check
      _
    $region11: #{tpu_custom_call.1} parent=1 // pred_check_branch
      %279 = sbr.rel (0) target = $region13
    $region12: #{tpu_custom_call.1} parent=1 // pred_region
      %s281 = ssub.s32 128, 128
      %282 = vsyncadd [#allocation3], %s281
      %s284 = sshll.u32 [#allocation2], 4
      %s285 = int_to_ptr.vmem [resolvable:$true] %s284
      %287 = dma.vmem_to_hbm [thread:$0]  %s285, 128, %s2, [#allocation3]
    $region13: #{tpu_custom_call.1} parent=1 // pred_fallthru
      _
    // Predicated region
    $region14: #{tpu_custom_call.1} parent=1 // pred_check
      _
    $region15: #{tpu_custom_call.1} parent=1 // pred_check_branch
      %289 = sbr.rel (0) target = $region17
    $region16: #{tpu_custom_call.1} parent=1 // pred_region
      %290 = dma.done [#allocation3], 128
    $region17: #{tpu_custom_call.1} parent=1 // pred_fallthru
      _
    %291 = vsyncpa [#allocation3], 1

</llo_original>
